<compile_context>
chip_gen: v7x
topology: tpu7x:2x2x1
jax: 0.10.0
libtpu: 0.0.40
codegen_flags: <defaults>
</compile_context>

<pallas_src>
import functools

import jax
import jax.numpy as jnp
from jax import lax
from jax.experimental import pallas as pl
from jax.experimental.pallas import tpu as pltpu

ALPHA = 10.0          # MixedLoss(alpha, gamma) -- deterministic, set in-script
GAMMA = 2.0
EPSILON = 1e-07
LANES = 128
MAX_TILE_ROWS = 4096  # 2 MiB/stream/buffer f32; sweep 8192 if VMEM allows
SUB_ROWS = 512        # in-kernel sub-chunk: bounds elementwise temporaries
PAD_LOGIT = -1e4      # pad logit: sigmoid==0, bce==0, focal==0 exactly


def _cdiv(a, b):
    return (a + b - 1) // b


def _round_up(a, b):
    return _cdiv(a, b) * b


def _sublane_align(dtype):
    # Native sublane packing: f32 -> 8, bf16 -> 16, int8/bool -> 32.
    return max(8, 32 // max(1, jnp.dtype(dtype).itemsize))


def _mixed_loss_kernel(x_ref, t_ref, out_ref, *, tile_rows, sub_rows,
                       n_inner, rows_valid, gamma, binary_targets):
    """Accumulate (intersection, union, focal_sum) lane-shaped partials.

    out_ref block: (1, 3, 8, 128) f32, resident across the inner grid axis
    (standard output-accumulator pattern).  The elementwise math is done in
    `sub_rows`-row chunks so temporaries stay ~= sub_rows*128*4 bytes each.
    """
    c = pl.program_id(0)
    i = pl.program_id(1)

    @pl.when(i == 0)
    def _init():
        out_ref[...] = jnp.zeros_like(out_ref)

    if rows_valid is not None:
        blk_row0 = (c * n_inner + i) * tile_rows   # global row of this block

    def lane_partial(v):
        # (R,128) -> (R/8, 8, 128) -> sum axis 0: pure vreg adds (VPU only);
        # the single cross-lane reduction happens once, in JAX, after the call.
        return jnp.sum(v.reshape(-1, 8, LANES), axis=0)

    def process(x_raw, t_raw, row_off):
        x = x_raw.astype(jnp.float32)
        t = t_raw.astype(jnp.float32)

        if rows_valid is not None:
            # In-kernel ragged-tail mask (replaces the old wrapper-side pad):
            # invalid rows are forced to (PAD_LOGIT, 0), which contribute
            # exactly zero to every partial sum.
            row_ids = blk_row0 + row_off + lax.broadcasted_iota(
                jnp.int32, x.shape, 0)
            valid = row_ids < rows_valid
            x = jnp.where(valid, x, PAD_LOGIT)
            t = jnp.where(valid, t, 0.0)

        # --- shared transcendentals ------------------------------------
        e = jnp.exp(-jnp.abs(x))                 # exp(-|x|), reused 2x
        r = 1.0 / (1.0 + e)
        p = jnp.where(x >= 0.0, r, e * r)        # sigmoid(x), stable

        # BCE-with-logits, folded: x - x*t + max(-x,0) + log1p(exp(-|x|))
        bce = jnp.maximum(x, 0.0) - x * t + jnp.log1p(e)

        # focal factor = sigmoid(-x*(2t-1)) ** gamma
        if binary_targets:
            sz = p + t * (1.0 - 2.0 * p)         # exact for t in {0,1}
        else:
            z = -x * (t * 2.0 - 1.0)             # exact soft-target path
            ez = jnp.exp(-jnp.abs(z))
            rz = 1.0 / (1.0 + ez)
            sz = jnp.where(z >= 0.0, rz, ez * rz)

        if gamma == 2.0:
            factor = sz * sz
        elif gamma == 1.0:
            factor = sz
        else:
            factor = jnp.exp(gamma * jnp.log(jnp.maximum(sz, 1e-30)))
        focal = factor * bce

        out_ref[0, 0, :, :] += lane_partial(p * t)   # intersection
        out_ref[0, 1, :, :] += lane_partial(p + t)   # union
        out_ref[0, 2, :, :] += lane_partial(focal)   # focal sum

    n_sub = tile_rows // sub_rows
    if n_sub == 1:
        process(x_ref[...], t_ref[...], 0)
    else:
        def body(k, carry):
            start = pl.multiple_of(k * sub_rows, sub_rows)
            process(x_ref[pl.ds(start, sub_rows), :],
                    t_ref[pl.ds(start, sub_rows), :],
                    start)
            return carry
        lax.fori_loop(0, n_sub, body, 0)


@functools.partial(
    jax.jit,
    static_argnames=("alpha", "gamma", "binary_targets", "num_cores"))
def mixed_loss(logits, targets, alpha=ALPHA, gamma=GAMMA,
               binary_targets=True, num_cores=1):
    """MixedLoss.forward: alpha * focal(x, t) - log(dice(x, t)).

    binary_targets=True uses the exact-for-{0,1} focal specialization;
    pass False for soft targets (matches the PyTorch module for any target).
    num_cores>1 adds a leading CORE_PARALLEL grid axis (v7x 2-TC split).
    """
    if logits.shape != targets.shape:
        raise ValueError("Target size must match input size")
    n_batch = logits.shape[0]
    total = logits.size

    x_flat = logits.reshape(-1)          # zero-cost reshape (contiguous)
    t_flat = targets.reshape(-1)

    sub_align = max(_sublane_align(logits.dtype), _sublane_align(targets.dtype))
    rows_exact = _cdiv(total, LANES)

    if rows_exact <= SUB_ROWS:
        # Small input: one block covering the whole (padded) array; the pad
        # copy is < 256 KiB so it is cheaper/simpler than in-kernel masking.
        tile_rows = _round_up(rows_exact, sub_align)
        rows = tile_rows
        n_blocks = 1
    else:
        # Large input: no row padding at all; the last (partial) block is
        # masked inside the kernel.  tile_rows is a multiple of SUB_ROWS.
        tile_rows = min(MAX_TILE_ROWS, (rows_exact // SUB_ROWS) * SUB_ROWS)
        rows = rows_exact
        n_blocks = _cdiv(rows, tile_rows)

    # Only possible copy for large inputs: the <128-element lane remainder.
    pad = rows * LANES - total
    if pad:
        x_flat = jnp.pad(x_flat, (0, pad),
                         constant_values=jnp.asarray(PAD_LOGIT, logits.dtype))
        t_flat = jnp.pad(t_flat, (0, pad))
    x2 = x_flat.reshape(rows, LANES)
    t2 = t_flat.reshape(rows, LANES)

    # Optional v7x 2-TensorCore split; never round up blocks on 1-TC chips.
    n_outer = num_cores if (num_cores > 1 and n_blocks >= 2 * num_cores) else 1
    n_inner = _cdiv(n_blocks, n_outer)
    n_blocks_total = n_outer * n_inner

    needs_mask = (n_blocks_total * tile_rows != rows)
    rows_valid = rows if needs_mask else None
    sub_rows = tile_rows if tile_rows <= SUB_ROWS else SUB_ROWS

    if n_blocks_total == n_blocks:
        def tile_index(c, i):
            return (c * n_inner + i, 0)
    else:
        # Duplicate (over-covered) blocks re-read the last valid block; their
        # contribution is zeroed by the in-kernel row mask.
        def tile_index(c, i):
            return (jnp.minimum(c * n_inner + i, n_blocks - 1), 0)

    kernel = functools.partial(
        _mixed_loss_kernel,
        tile_rows=tile_rows, sub_rows=sub_rows, n_inner=n_inner,
        rows_valid=rows_valid, gamma=float(gamma),
        binary_targets=bool(binary_targets))

    n_trans = 3 if binary_targets else 5
    cost = pl.CostEstimate(
        flops=int(30 * total),
        transcendentals=int(n_trans * total),
        bytes_accessed=int(x2.size * x2.dtype.itemsize
                           + t2.size * t2.dtype.itemsize
                           + n_outer * 3 * 8 * LANES * 4))

    if n_outer > 1:
        dim_sem = (pltpu.CORE_PARALLEL, pltpu.ARBITRARY)
    else:
        dim_sem = ("arbitrary", "arbitrary")

    sums = pl.pallas_call(
        kernel,
        out_shape=jax.ShapeDtypeStruct((n_outer, 3, 8, LANES), jnp.float32),
        grid=(n_outer, n_inner),
        in_specs=[pl.BlockSpec((tile_rows, LANES), tile_index),
                  pl.BlockSpec((tile_rows, LANES), tile_index)],
        out_specs=pl.BlockSpec((1, 3, 8, LANES), lambda c, i: (c, 0, 0, 0)),
        compiler_params=pltpu.CompilerParams(
            dimension_semantics=dim_sem,
            vmem_limit_bytes=32 * 1024 * 1024),
        cost_estimate=cost,
    )(x2, t2)

    # Final (cheap) cross-lane / cross-core reduction and scalar glue in JAX.
    totals = jnp.sum(sums, axis=(0, 2, 3))       # (3,)
    intersection, union, focal_sum = totals[0], totals[1], totals[2]

    # FocalLoss.forward returns loss.mean() over all elements.
    focal_mean = focal_sum / jnp.float32(total)

    # DiceLoss.forward
    dice = (2.0 * intersection + EPSILON) / (union + EPSILON)
    dice_loss = 1.0 - dice / jnp.float32(n_batch)

    # MixedLoss.forward (scalar; .mean() is identity).  Note: log(dice_loss)
    # is NaN/-inf when dice/n_batch >= 1, mirroring the PyTorch module.
    return alpha * focal_mean - jnp.log(dice_loss)


def _mixed_loss_ref(logits, targets, alpha=ALPHA, gamma=GAMMA):
    """Pure-JAX reference mirroring the PyTorch module, for verification."""
    x = logits.astype(jnp.float32)
    t = targets.astype(jnp.float32)
    n_batch = x.shape[0]

    max_val = jnp.maximum(-x, 0.0)
    bce = x - x * t + max_val + jnp.log(jnp.exp(-max_val) + jnp.exp(-x - max_val))
    invprobs = jax.nn.log_sigmoid(-x * (t * 2.0 - 1.0))
    focal = jnp.mean(jnp.exp(invprobs * gamma) * bce)

    p = jax.nn.sigmoid(x)
    inter = jnp.sum(p * t)
    union = jnp.sum(p + t)
    dice = (2.0 * inter + EPSILON) / (union + EPSILON)
    dice_loss = 1.0 - dice / n_batch

    return alpha * focal - jnp.log(dice_loss)


if __name__ == "__main__":
    key = jax.random.PRNGKey(0)
    k1, k2, k3, k4, k5, k6 = jax.random.split(key, 6)

    # 1) Small NCHW input: single lane-aligned block (no pad, no mask).
    x1 = jax.random.normal(k1, (2, 4, 16, 16), dtype=jnp.float32)
    t1 = jax.random.bernoulli(k2, 0.3, (2, 4, 16, 16)).astype(jnp.float32)
    out1 = jax.block_until_ready(mixed_loss(x1, t1))
    ref1 = _mixed_loss_ref(x1, t1)
    assert jnp.allclose(out1, ref1, rtol=1e-5, atol=1e-5), (out1, ref1)
    # Exact soft-target path gives the same answer on binary targets.
    out1e = jax.block_until_ready(mixed_loss(x1, t1, binary_targets=False))
    assert jnp.allclose(out1e, ref1, rtol=1e-5, atol=1e-5), (out1e, ref1)

    # 2) Larger input: multi-block grid, in-kernel sub-chunk loop and
    #    in-kernel ragged-tail masking (rows = 1152, tile = 1024).
    x2 = jax.random.normal(k3, (2, 4, 128, 144), dtype=jnp.float32)
    t2 = jax.random.bernoulli(k4, 0.3, (2, 4, 128, 144)).astype(jnp.float32)
    out2 = jax.block_until_ready(mixed_loss(x2, t2))
    ref2 = _mixed_loss_ref(x2, t2)
    # Looser tolerance: f32 accumulation-order differences at ~1.5e5 elements.
    assert jnp.allclose(out2, ref2, rtol=1e-4, atol=1e-4), (out2, ref2)

    # 3) Lane-unaligned element count + narrow (int8) target stream:
    #    exercises the small-input pad fallback and dtype-aware alignment.
    x3 = jax.random.normal(k5, (2, 3, 13, 11), dtype=jnp.float32)
    t3 = jax.random.bernoulli(k6, 0.3, (2, 3, 13, 11)).astype(jnp.int8)
    out3 = jax.block_until_ready(mixed_loss(x3, t3))
    ref3 = _mixed_loss_ref(x3, t3.astype(jnp.float32))
    assert jnp.allclose(out3, ref3, rtol=1e-5, atol=1e-5), (out3, ref3)

    print("KERNEL_OK")
</pallas_src>

<mosaic_0001>
module attributes {stable_mosaic.version = 11 : i64} {
  func.func @_mixed_loss_kernel(%arg0: i32, %arg1: i32, %arg2: memref<16x128xf32, #tpu.memory_space<vmem>>, %arg3: memref<16x128xf32, #tpu.memory_space<vmem>>, %arg4: memref<1x3x8x128xf32, #tpu.memory_space<vmem>>) attributes {dimension_semantics = [#tpu.dimension_semantics<arbitrary>, #tpu.dimension_semantics<arbitrary>], iteration_bounds = array<i64: 1, 1>, scalar_prefetch = 0 : i64, scratch_operands = 0 : i64, tpu.core_type = #tpu.core_type<tc>, window_params = [{transform_indices = @transform_0, window_bounds = array<i64: 16, 128>}, {transform_indices = @transform_1, window_bounds = array<i64: 16, 128>}, {transform_indices = @transform_2, window_bounds = array<i64: 1, 3, 8, 128>}]} {
    %c0_i32 = arith.constant 0 : i32
    %0 = arith.cmpi eq, %arg1, %c0_i32 : i32
    %1 = arith.extui %0 : i1 to i32
    %c0_i32_0 = arith.constant 0 : i32
    %2 = arith.cmpi ne, %1, %c0_i32_0 : i32
    scf.if %2 {
      %cst_35 = arith.constant 0.000000e+00 : f32
      %57 = vector.broadcast %cst_35 : f32 to vector<1x3x8x128xf32>
      %c0_36 = arith.constant 0 : index
      %c0_37 = arith.constant 0 : index
      %c0_38 = arith.constant 0 : index
      %c0_39 = arith.constant 0 : index
      %58 = vector.load %arg4[%c0_36, %c0_37, %c0_38, %c0_39] : memref<1x3x8x128xf32, #tpu.memory_space<vmem>>, vector<1x3x8x128xf32>
      tpu.vector_store %arg4[%c0_36, %c0_37, %c0_38, %c0_39], %57 {strides = array<i32>} : memref<1x3x8x128xf32, #tpu.memory_space<vmem>>, vector<1x3x8x128xf32>,
    } else {
    }
    %c0 = arith.constant 0 : index
    %c0_1 = arith.constant 0 : index
    %3 = vector.load %arg2[%c0, %c0_1] : memref<16x128xf32, #tpu.memory_space<vmem>>, vector<16x128xf32>
    %c0_2 = arith.constant 0 : index
    %c0_3 = arith.constant 0 : index
    %4 = vector.load %arg3[%c0_2, %c0_3] : memref<16x128xf32, #tpu.memory_space<vmem>>, vector<16x128xf32>
    %5 = math.absf %3 : vector<16x128xf32>
    %cst = arith.constant 0.000000e+00 : f32
    %6 = vector.broadcast %cst : f32 to vector<16x128xf32>
    %7 = arith.subf %6, %5 : vector<16x128xf32>
    %8 = math.exp %7 : vector<16x128xf32>
    %cst_4 = arith.constant 1.000000e+00 : f32
    %9 = vector.broadcast %cst_4 : f32 to vector<16x128xf32>
    %10 = arith.addf %9, %8 : vector<16x128xf32>
    %cst_5 = arith.constant 1.000000e+00 : f32
    %11 = vector.broadcast %cst_5 : f32 to vector<16x128xf32>
    %12 = arith.divf %11, %10 : vector<16x128xf32>
    %cst_6 = arith.constant 0.000000e+00 : f32
    %13 = vector.broadcast %cst_6 : f32 to vector<16x128xf32>
    %14 = arith.cmpf oge, %3, %13 : vector<16x128xf32>
    %15 = arith.mulf %8, %12 : vector<16x128xf32>
    %16 = arith.select %14, %12, %15 : vector<16x128xi1>, vector<16x128xf32>
    %cst_7 = arith.constant 0.000000e+00 : f32
    %17 = vector.broadcast %cst_7 : f32 to vector<16x128xf32>
    %18 = arith.maximumf %3, %17 : vector<16x128xf32>
    %19 = arith.mulf %3, %4 : vector<16x128xf32>
    %20 = arith.subf %18, %19 : vector<16x128xf32>
    %21 = math.log1p %8 : vector<16x128xf32>
    %22 = arith.addf %20, %21 : vector<16x128xf32>
    %cst_8 = arith.constant 2.000000e+00 : f32
    %23 = vector.broadcast %cst_8 : f32 to vector<16x128xf32>
    %24 = arith.mulf %23, %16 : vector<16x128xf32>
    %cst_9 = arith.constant 1.000000e+00 : f32
    %25 = vector.broadcast %cst_9 : f32 to vector<16x128xf32>
    %26 = arith.subf %25, %24 : vector<16x128xf32>
    %27 = arith.mulf %4, %26 : vector<16x128xf32>
    %28 = arith.addf %16, %27 : vector<16x128xf32>
    %29 = arith.mulf %28, %28 : vector<16x128xf32>
    %30 = arith.mulf %29, %22 : vector<16x128xf32>
    %c0_10 = arith.constant 0 : index
    %c0_11 = arith.constant 0 : index
    %c0_12 = arith.constant 0 : index
    %c0_13 = arith.constant 0 : index
    %31 = vector.load %arg4[%c0_10, %c0_11, %c0_12, %c0_13] : memref<1x3x8x128xf32, #tpu.memory_space<vmem>>, vector<1x1x8x128xf32>
    %32 = vector.shape_cast %31 : vector<1x1x8x128xf32> to vector<8x128xf32>
    %33 = arith.mulf %16, %4 : vector<16x128xf32>
    %34 = vector.shape_cast %33 : vector<16x128xf32> to vector<2x8x128xf32>
    %cst_14 = arith.constant dense<0.000000e+00> : vector<8x128xf32>
    %35 = vector.multi_reduction <add>, %34, %cst_14 [0] : vector<2x8x128xf32> to vector<8x128xf32>
    %36 = arith.addf %32, %35 : vector<8x128xf32>
    %c0_15 = arith.constant 0 : index
    %c0_16 = arith.constant 0 : index
    %c0_17 = arith.constant 0 : index
    %c0_18 = arith.constant 0 : index
    %37 = vector.load %arg4[%c0_15, %c0_16, %c0_17, %c0_18] : memref<1x3x8x128xf32, #tpu.memory_space<vmem>>, vector<1x1x8x128xf32>
    %38 = vector.shape_cast %37 : vector<1x1x8x128xf32> to vector<8x128xf32>
    %39 = vector.shape_cast %36 : vector<8x128xf32> to vector<1x1x8x128xf32>
    tpu.vector_store %arg4[%c0_15, %c0_16, %c0_17, %c0_18], %39 {strides = array<i32>} : memref<1x3x8x128xf32, #tpu.memory_space<vmem>>, vector<1x1x8x128xf32>,
    %c0_19 = arith.constant 0 : index
    %c1 = arith.constant 1 : index
    %c0_20 = arith.constant 0 : index
    %c0_21 = arith.constant 0 : index
    %40 = vector.load %arg4[%c0_19, %c1, %c0_20, %c0_21] : memref<1x3x8x128xf32, #tpu.memory_space<vmem>>, vector<1x1x8x128xf32>
    %41 = vector.shape_cast %40 : vector<1x1x8x128xf32> to vector<8x128xf32>
    %42 = arith.addf %16, %4 : vector<16x128xf32>
    %43 = vector.shape_cast %42 : vector<16x128xf32> to vector<2x8x128xf32>
    %cst_22 = arith.constant dense<0.000000e+00> : vector<8x128xf32>
    %44 = vector.multi_reduction <add>, %43, %cst_22 [0] : vector<2x8x128xf32> to vector<8x128xf32>
    %45 = arith.addf %41, %44 : vector<8x128xf32>
    %c0_23 = arith.constant 0 : index
    %c1_24 = arith.constant 1 : index
    %c0_25 = arith.constant 0 : index
    %c0_26 = arith.constant 0 : index
    %46 = vector.load %arg4[%c0_23, %c1_24, %c0_25, %c0_26] : memref<1x3x8x128xf32, #tpu.memory_space<vmem>>, vector<1x1x8x128xf32>
    %47 = vector.shape_cast %46 : vector<1x1x8x128xf32> to vector<8x128xf32>
    %48 = vector.shape_cast %45 : vector<8x128xf32> to vector<1x1x8x128xf32>
    tpu.vector_store %arg4[%c0_23, %c1_24, %c0_25, %c0_26], %48 {strides = array<i32>} : memref<1x3x8x128xf32, #tpu.memory_space<vmem>>, vector<1x1x8x128xf32>,
    %c0_27 = arith.constant 0 : index
    %c2 = arith.constant 2 : index
    %c0_28 = arith.constant 0 : index
    %c0_29 = arith.constant 0 : index
    %49 = vector.load %arg4[%c0_27, %c2, %c0_28, %c0_29] : memref<1x3x8x128xf32, #tpu.memory_space<vmem>>, vector<1x1x8x128xf32>
    %50 = vector.shape_cast %49 : vector<1x1x8x128xf32> to vector<8x128xf32>
    %51 = vector.shape_cast %30 : vector<16x128xf32> to vector<2x8x128xf32>
    %cst_30 = arith.constant dense<0.000000e+00> : vector<8x128xf32>
    %52 = vector.multi_reduction <add>, %51, %cst_30 [0] : vector<2x8x128xf32> to vector<8x128xf32>
    %53 = arith.addf %50, %52 : vector<8x128xf32>
    %c0_31 = arith.constant 0 : index
    %c2_32 = arith.constant 2 : index
    %c0_33 = arith.constant 0 : index
    %c0_34 = arith.constant 0 : index
    %54 = vector.load %arg4[%c0_31, %c2_32, %c0_33, %c0_34] : memref<1x3x8x128xf32, #tpu.memory_space<vmem>>, vector<1x1x8x128xf32>
    %55 = vector.shape_cast %54 : vector<1x1x8x128xf32> to vector<8x128xf32>
    %56 = vector.shape_cast %53 : vector<8x128xf32> to vector<1x1x8x128xf32>
    tpu.vector_store %arg4[%c0_31, %c2_32, %c0_33, %c0_34], %56 {strides = array<i32>} : memref<1x3x8x128xf32, #tpu.memory_space<vmem>>, vector<1x1x8x128xf32>,
    return
  }
  func.func @transform_0(%arg0: i32, %arg1: i32) -> (i32, i32) {
    %c1_i32 = arith.constant 1 : i32
    %0 = arith.muli %arg0, %c1_i32 : i32
    %1 = arith.addi %0, %arg1 : i32
    %c0_i32 = arith.constant 0 : i32
    %c0_i32_0 = arith.constant 0 : i32
    return %1, %c0_i32 : i32, i32
  }
  func.func @transform_1(%arg0: i32, %arg1: i32) -> (i32, i32) {
    %c1_i32 = arith.constant 1 : i32
    %0 = arith.muli %arg0, %c1_i32 : i32
    %1 = arith.addi %0, %arg1 : i32
    %c0_i32 = arith.constant 0 : i32
    %c0_i32_0 = arith.constant 0 : i32
    return %1, %c0_i32 : i32, i32
  }
  func.func @transform_2(%arg0: i32, %arg1: i32) -> (i32, i32, i32, i32) {
    %c0_i32 = arith.constant 0 : i32
    %c0_i32_0 = arith.constant 0 : i32
    %c0_i32_1 = arith.constant 0 : i32
    %c0_i32_2 = arith.constant 0 : i32
    return %arg0, %c0_i32, %c0_i32_0, %c0_i32_1 : i32, i32, i32, i32
  }
}

</mosaic_0001>

<llo_original>
// kernel: mixed_loss.1
$region0: #{mixed_loss.1}
  #allocation0 [shape = 'u32[]', space=smem, size = 0x4, offset = 0x4, fixed_abs, tag = 'smem constant byte address 0x4 - core index']
  #allocation1 [shape = 'u32[144,128]{1,0:T(1,128)}', space=vmem, size = 0x12000, scoped, tag = 'internal scratch']
  %s0 = inlined_call_operand.vmem [shape: f32[16,128], index: 0, kind: input, shape index: {}]
  %s1 = inlined_call_operand.vmem [shape: f32[16,128], index: 1, kind: input, shape index: {}]
  %s2 = inlined_call_operand.vmem [shape: f32[1,3,8,128], index: 2, kind: output, shape index: {}]
  %s3 = sld [smem:[#allocation0]]
  $region22: #{mixed_loss.1} parent=0
    _
  %s5 = ssub.s32 1, %s3
  %s6 = scalar_select 0, %s5, %s3
  // Predicated region
  $region2: #{mixed_loss.1} parent=0 // pred_check
    _
  $region3: #{mixed_loss.1} parent=0 // pred_check_branch
    %8 = sbr.rel (0) target = $region5
  $region4: #{mixed_loss.1} parent=0 // pred_region
    %s9 = sadd.s32 0, 0
    %s10 = smul.u32 2, %s9
    %p11 = scmp.lt.s32.totalorder %s10, 1
    %s12 = scalar_select %p11, %s10, 1
    %s13 = smul.addr %s12, 8
    %s14 = scalar_lea.vmem %s0, %s13
    %s15 = sadd.s32 0, 0
    %s16 = smul.u32 2, %s15
  $region5: #{mixed_loss.1} parent=0 // pred_fallthru
    _
  // Predicated region
  $region6: #{mixed_loss.1} parent=0 // pred_check
    _
  $region7: #{mixed_loss.1} parent=0 // pred_check_branch
    %18 = sbr.rel (0) target = $region9
  $region8: #{mixed_loss.1} parent=0 // pred_region
    %s19 = sadd.s32 0, 0
    %s20 = smul.u32 2, %s19
    %p21 = scmp.lt.s32.totalorder %s20, 1
    %s22 = scalar_select %p21, %s20, 1
    %s23 = smul.addr %s22, 8
    %s24 = scalar_lea.vmem %s1, %s23
    %s25 = sadd.s32 0, 0
    %s26 = smul.u32 2, %s25
  $region9: #{mixed_loss.1} parent=0 // pred_fallthru
    _
  %s27 = sadd.s32 0, 0
  %s28 = smul.u32 2, %s27
  %p29 = scmp.lt.s32.totalorder %s28, 1
  %s30 = scalar_select %p29, %s28, 1
  %s31 = smul.addr %s30, 8
  %s32 = scalar_lea.vmem %s0, %s31
  %s33 = sadd.s32 0, 0
  %s34 = smul.u32 2, %s33
  %p35 = scmp.lt.s32.totalorder %s34, 1
  %s36 = scalar_select %p35, %s34, 1
  %s37 = smul.addr %s36, 8
  %s38 = scalar_lea.vmem %s1, %s37
  %s39 = sadd.s32 0, 0
  %s40 = smul.u32 2, %s39
  %p41 = scmp.lt.s32.totalorder %s40, 1
  %s42 = scalar_select %p41, %s40, 1
  %s43 = smul.addr %s42, 8
  %s44 = scalar_lea.vmem %s0, %s43
  %s45 = sadd.s32 0, 0
  %s46 = smul.u32 2, %s45
  %s47 = sadd.s32 0, 0
  %s48 = smul.u32 2, %s47
  %p49 = scmp.lt.s32.totalorder %s48, 1
  %s50 = scalar_select %p49, %s48, 1
  %s51 = smul.addr %s50, 8
  %s52 = scalar_lea.vmem %s1, %s51
  %s53 = sadd.s32 0, 0
  %s54 = smul.u32 2, %s53
  %p55 = scmp.eq.s32.totalorder 0, 0
  // Predicated region
  $region10: #{mixed_loss.1} parent=0 // pred_check
    %p56 = pneg %p55
  $region11: #{mixed_loss.1} parent=0 // pred_check_branch
    %58 = sbr.rel (%p56) target = $region13
  $region12: #{mixed_loss.1} parent=0 // pred_region
    %59 = vst [vmem:[%s2] sm:$0xff] 0.0
    %60 = vst [vmem:[%s2 + $0x8] sm:$0xff] 0.0
    %61 = vst [vmem:[%s2 + $0x10] sm:$0xff] 0.0
  $region13: #{mixed_loss.1} parent=0 // pred_fallthru
    _
  %v62 = vld [vmem:[%s44] sm:$0xff]
  %v63 = vld [vmem:[%s44 + $0x8] sm:$0xff]
  %v64 = vld [vmem:[%s52] sm:$0xff]
  %v65 = vld [vmem:[%s52 + $0x8] sm:$0xff]
  %v66 = vand.u32 2147483647, %v62
  %v67 = vand.u32 2147483647, %v63
  %v68 = vsub.f32 0.0, %v66
  %v69 = vsub.f32 0.0, %v67
  %v70 = vmul.f32 %v68, 1.442695
  %v71 = vpow.pop %v70
  %v72 = vmul.f32 %v69, 1.442695
  %v73 = vpow.pop %v72
  %v74 = vadd.f32 %v71, 1.0
  %v75 = vadd.f32 %v73, 1.0
  %v76 = vrcp.pop %v74
  %v77 = vmul.f32 1.0, %v76
  %v78 = vrcp.pop %v75
  %v79 = vmul.f32 1.0, %v78
  %vm80 = vcmp.ge.f32.partialorder %v62, 0.0
  %vm81 = vcmp.ge.f32.partialorder %v63, 0.0
  %v82 = vmul.f32 %v71, %v77
  %v83 = vmul.f32 %v73, %v79
  %v84 = vsel %vm80, %v77, %v82
  %v85 = vsel %vm81, %v79, %v83
  %v86 = vmax.f32 %v62, 0.0
  %v87 = vmax.f32 %v63, 0.0
  %v88 = vmul.f32 %v62, %v64
  %v89 = vmul.f32 %v63, %v65
  %v90 = vsub.f32 %v86, %v88
  %v91 = vsub.f32 %v87, %v89
  %v92 = vadd.f32 %v71, 1.0
  %v93 = vlog2.pop %v92
  %v94 = vmul.f32 %v93, 0.6931472
  %v95 = vmul.f32 -0.5, %v71
  %v96 = vadd.f32 %v95, 1.0
  %v97 = vmul.f32 %v96, %v71
  %v98 = vand.u32 2147483647, %v71
  %vm99 = vcmp.lt.f32.partialorder %v98, 0.0004427343
  %v100 = vsel %vm99, %v97, %v94
  %v101 = vadd.f32 %v73, 1.0
  %v102 = vlog2.pop %v101
  %v103 = vmul.f32 %v102, 0.6931472
  %v104 = vmul.f32 -0.5, %v73
  %v105 = vadd.f32 %v104, 1.0
  %v106 = vmul.f32 %v105, %v73
  %v107 = vand.u32 2147483647, %v73
  %vm108 = vcmp.lt.f32.partialorder %v107, 0.0004427343
  %v109 = vsel %vm108, %v106, %v103
  %v110 = vadd.f32 %v90, %v100
  %v111 = vadd.f32 %v91, %v109
  %v112 = vmul.f32 %v84, 2.0
  %v113 = vmul.f32 %v85, 2.0
  %v114 = vsub.f32 1.0, %v112
  %v115 = vsub.f32 1.0, %v113
  %v116 = vmul.f32 %v64, %v114
  %v117 = vmul.f32 %v65, %v115
  %v118 = vadd.f32 %v84, %v116
  %v119 = vadd.f32 %v85, %v117
  %v120 = vmul.f32 %v118, %v118
  %v121 = vmul.f32 %v119, %v119
  %v122 = vmul.f32 %v120, %v110
  %v123 = vmul.f32 %v121, %v111
  %v124 = vld [vmem:[%s2] sm:$0xff]
  %v125 = vmul.f32 %v84, %v64
  %v126 = vmul.f32 %v85, %v65
  %v127 = vadd.f32 %v125, %v126
  %v128 = vadd.f32 %v124, %v127
  %129 = vst [vmem:[%s2] sm:$0xff] %v128
  %s130 = scalar_lea.vmem %s2, 8
  %v131 = vld [vmem:[%s130] sm:$0xff]
  %v132 = vadd.f32 %v84, %v64
  %v133 = vadd.f32 %v85, %v65
  %v134 = vadd.f32 %v132, %v133
  %v135 = vadd.f32 %v131, %v134
  %136 = vst [vmem:[%s130] sm:$0xff] %v135
  %s137 = scalar_lea.vmem %s2, 16
  %v138 = vld [vmem:[%s137] sm:$0xff]
  %v139 = vadd.f32 %v122, %v123
  %v140 = vadd.f32 %v138, %v139
  %141 = vst [vmem:[%s137] sm:$0xff] %v140
  // Predicated region
  $region14: #{mixed_loss.1} parent=0 // pred_check
    _
  $region15: #{mixed_loss.1} parent=0 // pred_check_branch
    %143 = sbr.rel (0) target = $region17
  $region16: #{mixed_loss.1} parent=0 // pred_region
    _
  $region17: #{mixed_loss.1} parent=0 // pred_fallthru
    _
  // Predicated region
  $region18: #{mixed_loss.1} parent=0 // pred_check
    _
  $region19: #{mixed_loss.1} parent=0 // pred_check_branch
    %145 = sbr.rel (0) target = $region21
  $region20: #{mixed_loss.1} parent=0 // pred_region
    _
  $region21: #{mixed_loss.1} parent=0 // pred_fallthru
    _

</llo_original>
